<compile_context>
chip_gen: v6e
topology: v6e:2x2x1
jax: 0.10.0
libtpu: 0.0.40
codegen_flags: <defaults>
</compile_context>

<pallas_src>
import jax
import jax.numpy as jnp
from jax import lax
from jax.experimental import pallas as pl
from jax.experimental.pallas import tpu as pltpu


# --------------------------------- kernel -----------------------------------

def diffusion_embedding_kernel(ids_ref, table_ref, w1_ref, b1_ref,
                               w2_ref, b2_ref, o_ref):
    ids = ids_ref[...]                                    # (TB, 1) int32
    tb = ids.shape[0]
    s_pad = table_ref.shape[0]

    # Embedding gather as a one-hot MXU matmul: onehot[b, s] = (s == ids[b]).
    step_iota = lax.broadcasted_iota(jnp.int32, (tb, s_pad), 1)
    onehot = (step_iota == ids).astype(jnp.float32)       # (TB, S_pad)
    x = jnp.dot(onehot, table_ref[...],
                preferred_element_type=jnp.float32)       # (TB, E)

    # projection1 + SiLU
    h = jnp.dot(x, w1_ref[...], preferred_element_type=jnp.float32) + b1_ref[...]
    h = h * jax.nn.sigmoid(h)

    # projection2 + SiLU
    h = jnp.dot(h, w2_ref[...], preferred_element_type=jnp.float32) + b2_ref[...]
    h = h * jax.nn.sigmoid(h)

    o_ref[...] = h.astype(o_ref.dtype)


# -------------------------------- wrapper ------------------------------------

def make_diffusion_embedding(table, w1, b1, w2, b2, *, block_b=256):
    """Builds the fused forward with parameters repacked ONCE (hoisted out of
    the hot path).

    table: (num_steps, embedding_dim) sin/cos table (the registered buffer).
    w1: (projection_dim, embedding_dim), b1: (projection_dim,)   [PyTorch Linear layout]
    w2: (projection_dim, projection_dim), b2: (projection_dim,)
    Returns forward(diffusion_step: (B,) int) -> (B, projection_dim) float32.
    """
    S, E = table.shape
    P = w1.shape[0]

    # One-time repacking: transpose Linear weights to (in, out), cast to f32,
    # reshape biases to (1, P), and pad num_steps to a multiple of 8 so the
    # one-hot matmul K dimension is sublane-aligned.
    S_pad = ((S + 7) // 8) * 8
    tab = jnp.zeros((S_pad, E), jnp.float32).at[:S, :].set(table.astype(jnp.float32))
    w1t = jnp.transpose(w1).astype(jnp.float32)           # (E, P)
    w2t = jnp.transpose(w2).astype(jnp.float32)           # (P, P)
    b1r = b1.reshape(1, P).astype(jnp.float32)
    b2r = b2.reshape(1, P).astype(jnp.float32)

    @jax.jit
    def forward(diffusion_step):
        B = diffusion_step.shape[0]
        # Tile: multiple of 8, at most block_b; large B -> big tiles (MXU-full),
        # B > TB naturally yields >=2 grid steps for v7x's two TensorCores.
        TB = min(((max(B, 1) + 7) // 8) * 8, block_b)
        n_tiles = pl.cdiv(B, TB)
        Bp = n_tiles * TB

        ids = diffusion_step.astype(jnp.int32).reshape(B, 1)
        if Bp != B:
            # Only pad when the batch is not already tile-aligned.
            ids = jnp.pad(ids, ((0, Bp - B), (0, 0)))

        const2 = lambda a: pl.BlockSpec(a.shape, lambda i: (0, 0))

        cost = pl.CostEstimate(
            flops=2 * Bp * (S_pad * E + E * P + P * P),
            transcendentals=2 * Bp * P,
            bytes_accessed=4 * (Bp + S_pad * E + E * P + P + P * P + P + Bp * P),
        )

        out = pl.pallas_call(
            diffusion_embedding_kernel,
            out_shape=jax.ShapeDtypeStruct((Bp, P), jnp.float32),
            grid=(n_tiles,),
            in_specs=[
                pl.BlockSpec((TB, 1), lambda i: (i, 0)),   # step indices (batch tile)
                const2(tab),                               # embedding table (constant)
                const2(w1t), const2(b1r),
                const2(w2t), const2(b2r),
            ],
            out_specs=pl.BlockSpec((TB, P), lambda i: (i, 0)),
            compiler_params=pltpu.CompilerParams(
                dimension_semantics=("parallel",)),
            cost_estimate=cost,
        )(ids, tab, w1t, b1r, w2t, b2r)

        return out[:B] if Bp != B else out

    return forward


# ------------------------- embedding-table construction ----------------------

def build_embedding(num_steps, embedding_dim):
    """Matches DiffusionEmbedding._build_embedding(num_steps, embedding_dim/2)."""
    half = embedding_dim // 2
    steps = jnp.arange(num_steps, dtype=jnp.float32)[:, None]                            # (S, 1)
    freqs = (10.0 ** (jnp.arange(half, dtype=jnp.float32) / (half - 1) * 4.0))[None, :]  # (1, half)
    t = steps * freqs                                                                    # (S, half)
    return jnp.concatenate([jnp.sin(t), jnp.cos(t)], axis=1)                             # (S, embedding_dim)


# ----------------------------- pure-JAX reference ----------------------------

def ref_forward(diffusion_step, table, w1, b1, w2, b2):
    x = table[diffusion_step]
    x = jnp.dot(x, w1.T, precision=lax.Precision.HIGHEST) + b1
    x = x * jax.nn.sigmoid(x)
    x = jnp.dot(x, w2.T, precision=lax.Precision.HIGHEST) + b2
    x = x * jax.nn.sigmoid(x)
    return x


# ---------------------------------- main -------------------------------------

if __name__ == "__main__":
    num_steps, embedding_dim, projection_dim, B = 50, 128, 128, 8

    key = jax.random.PRNGKey(0)
    k1, k2, k3, k4, k5 = jax.random.split(key, 5)

    table = build_embedding(num_steps, embedding_dim)
    w1 = 0.1 * jax.random.normal(k1, (projection_dim, embedding_dim), jnp.float32)
    b1 = 0.1 * jax.random.normal(k2, (projection_dim,), jnp.float32)
    w2 = 0.1 * jax.random.normal(k3, (projection_dim, projection_dim), jnp.float32)
    b2 = 0.1 * jax.random.normal(k4, (projection_dim,), jnp.float32)
    diffusion_step = jax.random.randint(k5, (B,), 0, num_steps, dtype=jnp.int32)

    fwd = make_diffusion_embedding(table, w1, b1, w2, b2)
    out = jax.block_until_ready(fwd(diffusion_step))

    ref = jax.block_until_ready(ref_forward(diffusion_step, table, w1, b1, w2, b2))
    assert out.shape == (B, projection_dim) and out.dtype == jnp.float32
    err = jnp.max(jnp.abs(out - ref))
    assert jnp.allclose(out, ref, atol=1e-4, rtol=1e-4), f"max abs err = {err}"

    print("KERNEL_OK")
</pallas_src>

<mosaic_0001>
module attributes {stable_mosaic.version = 11 : i64} {
  func.func @diffusion_embedding_kernel(%arg0: i32, %arg1: memref<8x1xi32, #tpu.memory_space<vmem>>, %arg2: memref<56x128xf32, #tpu.memory_space<vmem>>, %arg3: memref<128x128xf32, #tpu.memory_space<vmem>>, %arg4: memref<1x128xf32, #tpu.memory_space<vmem>>, %arg5: memref<128x128xf32, #tpu.memory_space<vmem>>, %arg6: memref<1x128xf32, #tpu.memory_space<vmem>>, %arg7: memref<8x128xf32, #tpu.memory_space<vmem>>) attributes {dimension_semantics = [#tpu.dimension_semantics<parallel>], iteration_bounds = array<i64: 1>, scalar_prefetch = 0 : i64, scratch_operands = 0 : i64, tpu.core_type = #tpu.core_type<tc>, window_params = [{transform_indices = @transform_0, window_bounds = array<i64: 8, 1>}, {pipeline_mode = #tpu.pipeline_mode<synchronous>, transform_indices = @transform_1, window_bounds = array<i64: 56, 128>}, {pipeline_mode = #tpu.pipeline_mode<synchronous>, transform_indices = @transform_2, window_bounds = array<i64: 128, 128>}, {pipeline_mode = #tpu.pipeline_mode<synchronous>, transform_indices = @transform_3, window_bounds = array<i64: 1, 128>}, {pipeline_mode = #tpu.pipeline_mode<synchronous>, transform_indices = @transform_4, window_bounds = array<i64: 128, 128>}, {pipeline_mode = #tpu.pipeline_mode<synchronous>, transform_indices = @transform_5, window_bounds = array<i64: 1, 128>}, {transform_indices = @transform_6, window_bounds = array<i64: 8, 128>}]} {
    %c0 = arith.constant 0 : index
    %c0_0 = arith.constant 0 : index
    %0 = vector.load %arg1[%c0, %c0_0] : memref<8x1xi32, #tpu.memory_space<vmem>>, vector<8x1xi32>
    %1 = tpu.iota {dimensions = array<i32: 1>} : vector<8x56xi32>
    %2 = vector.broadcast %0 : vector<8x1xi32> to vector<8x56xi32>
    %3 = arith.cmpi eq, %1, %2 : vector<8x56xi32>
    %4 = arith.extui %3 : vector<8x56xi1> to vector<8x56xi32>
    %5 = arith.sitofp %4 : vector<8x56xi32> to vector<8x56xf32>
    %c0_1 = arith.constant 0 : index
    %c0_2 = arith.constant 0 : index
    %6 = vector.load %arg2[%c0_1, %c0_2] : memref<56x128xf32, #tpu.memory_space<vmem>>, vector<56x128xf32>
    %cst = arith.constant dense<0.000000e+00> : vector<8x128xf32>
    %7 = tpu.matmul %5, %6, %cst {dimension_numbers = #tpu.dot_dimension_numbers<[1], [0], [0], [1], [0, 0, 1, 1], [], []>} : vector<8x56xf32>, vector<56x128xf32>, vector<8x128xf32> -> vector<8x128xf32>
    %c0_3 = arith.constant 0 : index
    %c0_4 = arith.constant 0 : index
    %8 = vector.load %arg3[%c0_3, %c0_4] : memref<128x128xf32, #tpu.memory_space<vmem>>, vector<128x128xf32>
    %cst_5 = arith.constant dense<0.000000e+00> : vector<8x128xf32>
    %9 = tpu.matmul %7, %8, %cst_5 {dimension_numbers = #tpu.dot_dimension_numbers<[1], [0], [0], [1], [0, 0, 1, 1], [], []>} : vector<8x128xf32>, vector<128x128xf32>, vector<8x128xf32> -> vector<8x128xf32>
    %c0_6 = arith.constant 0 : index
    %c0_7 = arith.constant 0 : index
    %10 = vector.load %arg4[%c0_6, %c0_7] : memref<1x128xf32, #tpu.memory_space<vmem>>, vector<1x128xf32>
    %11 = vector.broadcast %10 : vector<1x128xf32> to vector<8x128xf32>
    %12 = arith.addf %9, %11 : vector<8x128xf32>
    %13 = arith.negf %12 : vector<8x128xf32>
    %14 = math.exp %13 : vector<8x128xf32>
    %cst_8 = arith.constant 1.000000e+00 : f32
    %15 = vector.broadcast %cst_8 : f32 to vector<8x128xf32>
    %16 = arith.addf %15, %14 : vector<8x128xf32>
    %17 = arith.divf %15, %16 : vector<8x128xf32>
    %18 = arith.mulf %12, %17 : vector<8x128xf32>
    %c0_9 = arith.constant 0 : index
    %c0_10 = arith.constant 0 : index
    %19 = vector.load %arg5[%c0_9, %c0_10] : memref<128x128xf32, #tpu.memory_space<vmem>>, vector<128x128xf32>
    %cst_11 = arith.constant dense<0.000000e+00> : vector<8x128xf32>
    %20 = tpu.matmul %18, %19, %cst_11 {dimension_numbers = #tpu.dot_dimension_numbers<[1], [0], [0], [1], [0, 0, 1, 1], [], []>} : vector<8x128xf32>, vector<128x128xf32>, vector<8x128xf32> -> vector<8x128xf32>
    %c0_12 = arith.constant 0 : index
    %c0_13 = arith.constant 0 : index
    %21 = vector.load %arg6[%c0_12, %c0_13] : memref<1x128xf32, #tpu.memory_space<vmem>>, vector<1x128xf32>
    %22 = vector.broadcast %21 : vector<1x128xf32> to vector<8x128xf32>
    %23 = arith.addf %20, %22 : vector<8x128xf32>
    %24 = arith.negf %23 : vector<8x128xf32>
    %25 = math.exp %24 : vector<8x128xf32>
    %cst_14 = arith.constant 1.000000e+00 : f32
    %26 = vector.broadcast %cst_14 : f32 to vector<8x128xf32>
    %27 = arith.addf %26, %25 : vector<8x128xf32>
    %28 = arith.divf %26, %27 : vector<8x128xf32>
    %29 = arith.mulf %23, %28 : vector<8x128xf32>
    %c0_15 = arith.constant 0 : index
    %c0_16 = arith.constant 0 : index
    %30 = vector.load %arg7[%c0_15, %c0_16] : memref<8x128xf32, #tpu.memory_space<vmem>>, vector<8x128xf32>
    tpu.vector_store %arg7[%c0_15, %c0_16], %29 {strides = array<i32>} : memref<8x128xf32, #tpu.memory_space<vmem>>, vector<8x128xf32>,
    return
  }
  func.func @transform_0(%arg0: i32) -> (i32, i32) {
    %c0_i32 = arith.constant 0 : i32
    %c0_i32_0 = arith.constant 0 : i32
    return %arg0, %c0_i32 : i32, i32
  }
  func.func @transform_1(%arg0: i32) -> (i32, i32) {
    %c0_i32 = arith.constant 0 : i32
    %c0_i32_0 = arith.constant 0 : i32
    %c0_i32_1 = arith.constant 0 : i32
    return %c0_i32, %c0_i32_0 : i32, i32
  }
  func.func @transform_2(%arg0: i32) -> (i32, i32) {
    %c0_i32 = arith.constant 0 : i32
    %c0_i32_0 = arith.constant 0 : i32
    %c0_i32_1 = arith.constant 0 : i32
    return %c0_i32, %c0_i32_0 : i32, i32
  }
  func.func @transform_3(%arg0: i32) -> (i32, i32) {
    %c0_i32 = arith.constant 0 : i32
    %c0_i32_0 = arith.constant 0 : i32
    %c0_i32_1 = arith.constant 0 : i32
    return %c0_i32, %c0_i32_0 : i32, i32
  }
  func.func @transform_4(%arg0: i32) -> (i32, i32) {
    %c0_i32 = arith.constant 0 : i32
    %c0_i32_0 = arith.constant 0 : i32
    %c0_i32_1 = arith.constant 0 : i32
    return %c0_i32, %c0_i32_0 : i32, i32
  }
  func.func @transform_5(%arg0: i32) -> (i32, i32) {
    %c0_i32 = arith.constant 0 : i32
    %c0_i32_0 = arith.constant 0 : i32
    %c0_i32_1 = arith.constant 0 : i32
    return %c0_i32, %c0_i32_0 : i32, i32
  }
  func.func @transform_6(%arg0: i32) -> (i32, i32) {
    %c0_i32 = arith.constant 0 : i32
    %c0_i32_0 = arith.constant 0 : i32
    return %arg0, %c0_i32 : i32, i32
  }
}

</mosaic_0001>

<llo_original>
// kernel: forward.1
$region0: #{forward.1}
  #allocation0 [shape = 'u32[]', space=smem, size = 0x4, offset = 0x4, fixed_abs, tag = 'smem constant byte address 0x4 - core index']
  #allocation1 [shape = 'u32[144,128]{1,0:T(1,128)}', space=vmem, size = 0x12000, scoped, tag = 'internal scratch']
  %s0 = inlined_call_operand.vmem [shape: s32[8,1], index: 0, kind: input, shape index: {}]
  %s1 = inlined_call_operand.hbm [shape: f32[56,128], index: 1, kind: input, shape index: {}]
  %s2 = inlined_call_operand.hbm [shape: f32[128,128], index: 2, kind: input, shape index: {}]
  %s3 = inlined_call_operand.vmem [shape: f32[1,128], index: 3, kind: input, shape index: {}]
  %s4 = inlined_call_operand.hbm [shape: f32[128,128], index: 4, kind: input, shape index: {}]
  %s5 = inlined_call_operand.vmem [shape: f32[1,128], index: 5, kind: input, shape index: {}]
  %s6 = inlined_call_operand.hbm [shape: f32[8,128], index: 6, kind: output, shape index: {}]
  %s7 = sld [smem:[#allocation0]]
  $region46: #{forward.1} parent=0
    _
  %s9 = ssub.s32 1, %s7
  %s10 = scalar_select 0, %s9, %s7
  $region1: #{forward.1} parent=0
    #allocation2 [shape = 'u8[28672]{0}', space=vmem, size = 0x7000, scoped, tag = 'input window, operand 1, single buffered']
    #allocation3 [shape = 's32[1]{0}', space=sflag, size = 0x4, scoped, tag = 'scoped memory for forward.1']
    #allocation4 [shape = 's32[1]{0}', space=sflag, size = 0x4, scoped, tag = 'scoped memory for forward.1']
    #allocation5 [shape = 'u8[65536]{0}', space=vmem, size = 0x10000, scoped, tag = 'input window, operand 2, single buffered']
    #allocation6 [shape = 's32[1]{0}', space=sflag, size = 0x4, scoped, tag = 'scoped memory for forward.1']
    #allocation7 [shape = 'u8[65536]{0}', space=vmem, size = 0x10000, scoped, tag = 'input window, operand 4, single buffered']
    #allocation8 [shape = 'u8[4096]{0}', space=vmem, size = 0x1000, scoped, tag = 'output window, operand 0, single buffered']
    %11 = vsyncpa [#allocation3], 0
    %12 = vsyncpa [#allocation6], 0
    %13 = vsyncpa [#allocation4], 0
    // Predicated region
    $region2: #{forward.1} parent=1 // pred_check
      _
    $region3: #{forward.1} parent=1 // pred_check_branch
      %15 = sbr.rel (0) target = $region5
    $region4: #{forward.1} parent=1 // pred_region
      _
    $region5: #{forward.1} parent=1 // pred_fallthru
      _
    // Predicated region
    $region6: #{forward.1} parent=1 // pred_check
      _
    $region7: #{forward.1} parent=1 // pred_check_branch
      %17 = sbr.rel (0) target = $region9
    $region8: #{forward.1} parent=1 // pred_region
      %s19 = ssub.s32 896, 896
      %20 = vsyncadd [#allocation3], %s19
      %s21 = sshll.u32 [#allocation2], 4
      %s22 = int_to_ptr.vmem [resolvable:$true] %s21
      %27 = dma.hbm_to_vmem [thread:$0]  %s1, 896, %s22, [#allocation3], 128, 128, 8
    $region9: #{forward.1} parent=1 // pred_fallthru
      _
    // Predicated region
    $region10: #{forward.1} parent=1 // pred_check
      _
    $region11: #{forward.1} parent=1 // pred_check_branch
      %29 = sbr.rel (0) target = $region13
    $region12: #{forward.1} parent=1 // pred_region
      %s31 = ssub.s32 2048, 2048
      %32 = vsyncadd [#allocation6], %s31
      %s33 = sshll.u32 [#allocation5], 4
      %s34 = int_to_ptr.vmem [resolvable:$true] %s33
      %39 = dma.hbm_to_vmem [thread:$0]  %s2, 2048, %s34, [#allocation6], 128, 128, 8
    $region13: #{forward.1} parent=1 // pred_fallthru
      _
    // Predicated region
    $region14: #{forward.1} parent=1 // pred_check
      _
    $region15: #{forward.1} parent=1 // pred_check_branch
      %41 = sbr.rel (0) target = $region17
    $region16: #{forward.1} parent=1 // pred_region
      _
    $region17: #{forward.1} parent=1 // pred_fallthru
      _
    // Predicated region
    $region18: #{forward.1} parent=1 // pred_check
      _
    $region19: #{forward.1} parent=1 // pred_check_branch
      %43 = sbr.rel (0) target = $region21
    $region20: #{forward.1} parent=1 // pred_region
      %s45 = ssub.s32 2048, 2048
      %46 = vsyncadd [#allocation6], %s45
      %s47 = sshll.u32 [#allocation7], 4
      %s48 = int_to_ptr.vmem [resolvable:$true] %s47
      %53 = dma.hbm_to_vmem [thread:$0]  %s4, 2048, %s48, [#allocation6], 128, 128, 8
    $region21: #{forward.1} parent=1 // pred_fallthru
      _
    // Predicated region
    $region22: #{forward.1} parent=1 // pred_check
      _
    $region23: #{forward.1} parent=1 // pred_check_branch
      %55 = sbr.rel (0) target = $region25
    $region24: #{forward.1} parent=1 // pred_region
      _
    $region25: #{forward.1} parent=1 // pred_fallthru
      _
    // Predicated region
    $region26: #{forward.1} parent=1 // pred_check
      _
    $region27: #{forward.1} parent=1 // pred_check_branch
      %57 = sbr.rel (0) target = $region29
    $region28: #{forward.1} parent=1 // pred_region
      %58 = dma.done [#allocation3], 896
    $region29: #{forward.1} parent=1 // pred_fallthru
      _
    // Predicated region
    $region30: #{forward.1} parent=1 // pred_check
      _
    $region31: #{forward.1} parent=1 // pred_check_branch
      %60 = sbr.rel (0) target = $region33
    $region32: #{forward.1} parent=1 // pred_region
      %61 = dma.done [#allocation6], 2048
    $region33: #{forward.1} parent=1 // pred_fallthru
      _
    // Predicated region
    $region34: #{forward.1} parent=1 // pred_check
      _
    $region35: #{forward.1} parent=1 // pred_check_branch
      %63 = sbr.rel (0) target = $region37
    $region36: #{forward.1} parent=1 // pred_region
      %64 = dma.done [#allocation6], 2048
    $region37: #{forward.1} parent=1 // pred_fallthru
      _
    %v65 = vld [vmem:[%s0] sm:$0xff]
    %v66 = vlaneseq
    %v67 = vand.u32 %v66, 127
    %68 = vset.pattern.permute.xlu0 0
    %69 = vperm.xlu0 %68, %v65
    %v70 = vpop.permute.xlu0 %69
    %vm71 = vcmp.eq.s32.totalorder %v67, %v70
    %v72 = vsel %vm71, 1, 0
    %v73 = vcvt.s32.f32 %v72
    %v74 = vld [vmem:[#allocation2] sm:$0xff]
    %v75 = vld [vmem:[#allocation2 + $0x8] sm:$0xff]
    %v76 = vld [vmem:[#allocation2 + $0x10] sm:$0xff]
    %v77 = vld [vmem:[#allocation2 + $0x18] sm:$0xff]
    %v78 = vld [vmem:[#allocation2 + $0x20] sm:$0xff]
    %v79 = vld [vmem:[#allocation2 + $0x28] sm:$0xff]
    %v80 = vld [vmem:[#allocation2 + $0x30] sm:$0xff]
    %vm81 = vcmask 457728
    %v83 = vsel %vm81, %v73, 0
    %85 = vmatprep.subr.mxu0 0.0
    %86 = vmatpush1.msra.mxu0 0.0
    %87 = vmatprep.subr.mxu0 0.0
    %88 = vmatpush1.msra.mxu0 0.0
    %89 = vmatprep.subr.mxu0 0.0
    %90 = vmatpush1.msra.mxu0 0.0
    %91 = vmatprep.subr.mxu0 0.0
    %92 = vmatpush1.msra.mxu0 0.0
    %93 = vmatprep.subr.mxu0 0.0
    %94 = vmatpush1.msra.mxu0 0.0
    %95 = vmatprep.subr.mxu0 0.0
    %96 = vmatpush1.msra.mxu0 0.0
    %97 = vmatprep.subr.mxu0 0.0
    %98 = vmatpush1.msra.mxu0 0.0
    %99 = vmatprep.subr.mxu0 0.0
    %100 = vmatpush1.msra.mxu0 0.0
    %101 = vmatprep.subr.mxu0 0.0
    %102 = vmatpush1.msra.mxu0 0.0
    %103 = vmatprep.subr.mxu0 0.0
    %104 = vmatpush1.msra.mxu0 %v80
    %105 = vmatprep.subr.mxu0 0.0
    %106 = vmatpush1.msra.mxu0 %v79
    %107 = vmatprep.subr.mxu0 0.0
    %108 = vmatpush1.msra.mxu0 %v78
    %109 = vmatprep.subr.mxu0 0.0
    %110 = vmatpush1.msra.mxu0 %v77
    %111 = vmatprep.subr.mxu0 0.0
    %112 = vmatpush1.msra.mxu0 %v76
    %113 = vmatprep.subr.mxu0 0.0
    %114 = vmatpush1.msra.mxu0 %v75
    %115 = vmatprep.subr.mxu0 0.0
    %116 = vmatpush1.msra.mxu0 %v74
    %117 = vmatprep.subr.mxu0 0.0
    %118 = vmatpush2.msra.mxu0 0.0
    %119 = vmatprep.subr.mxu0 0.0
    %120 = vmatpush2.msra.mxu0 0.0
    %121 = vmatprep.subr.mxu0 0.0
    %122 = vmatpush2.msra.mxu0 0.0
    %123 = vmatprep.subr.mxu0 0.0
    %124 = vmatpush2.msra.mxu0 0.0
    %125 = vmatprep.subr.mxu0 0.0
    %126 = vmatpush2.msra.mxu0 0.0
    %127 = vmatprep.subr.mxu0 0.0
    %128 = vmatpush2.msra.mxu0 0.0
    %129 = vmatprep.subr.mxu0 0.0
    %130 = vmatpush2.msra.mxu0 0.0
    %131 = vmatprep.subr.mxu0 0.0
    %132 = vmatpush2.msra.mxu0 0.0
    %133 = vmatprep.subr.mxu0 0.0
    %134 = vmatpush2.msra.mxu0 0.0
    %135 = vmatprep.subr.mxu0 0.0
    %136 = vmatpush2.msra.mxu0 0.0
    %137 = vmatprep.subr.mxu0 0.0
    %138 = vmatpush2.msra.mxu0 0.0
    %139 = vmatprep.subr.mxu0 0.0
    %140 = vmatpush2.msra.mxu0 0.0
    %141 = vmatprep.subr.mxu0 0.0
    %142 = vmatpush2.msra.mxu0 0.0
    %143 = vmatprep.subr.mxu0 0.0
    %144 = vmatpush2.msra.mxu0 0.0
    %145 = vmatprep.subr.mxu0 0.0
    %146 = vmatpush2.msra.mxu0 0.0
    %147 = vmatprep.subr.mxu0 0.0
    %148 = vmatpush2.msra.mxu0 0.0
    %149 = vmatprep.mubr.f32.mxu0 0.0
    %150 = vmatmul.mubr.f32.gmra.mxu0 %v83
    %v151 = vpop.f32.mrf.mxu0
    %v152 = vadd.f32 0.0, %v151
    %v153 = vpop.f32.mrf.mxu0
    %154 = vdwg.mxu0
    %v155 = vld [vmem:[#allocation5] sm:$0xff]
    %v156 = vld [vmem:[#allocation5 + $0x8] sm:$0xff]
    %v157 = vld [vmem:[#allocation5 + $0x10] sm:$0xff]
    %v158 = vld [vmem:[#allocation5 + $0x18] sm:$0xff]
    %v159 = vld [vmem:[#allocation5 + $0x20] sm:$0xff]
    %v160 = vld [vmem:[#allocation5 + $0x28] sm:$0xff]
    %v161 = vld [vmem:[#allocation5 + $0x30] sm:$0xff]
    %v162 = vld [vmem:[#allocation5 + $0x38] sm:$0xff]
    %v163 = vld [vmem:[#allocation5 + $0x40] sm:$0xff]
    %v164 = vld [vmem:[#allocation5 + $0x48] sm:$0xff]
    %v165 = vld [vmem:[#allocation5 + $0x50] sm:$0xff]
    %v166 = vld [vmem:[#allocation5 + $0x58] sm:$0xff]
    %v167 = vld [vmem:[#allocation5 + $0x60] sm:$0xff]
    %v168 = vld [vmem:[#allocation5 + $0x68] sm:$0xff]
    %v169 = vld [vmem:[#allocation5 + $0x70] sm:$0xff]
    %v170 = vld [vmem:[#allocation5 + $0x78] sm:$0xff]
    %v171 = vld [vmem:[%s3] sm:$0x1]
    %v173 = vlaneseq
    %v174 = vshrl.u32 %v173, 7
    %v175 = vsub.s32 0, %v174
    %v176 = vrot.slane %v171, %v175
    %178 = vmatprep.subr.mxu0 0.0
    %179 = vmatpush1.msra.mxu0 %v170
    %180 = vmatprep.subr.mxu0 0.0
    %181 = vmatpush1.msra.mxu0 %v169
    %182 = vmatprep.subr.mxu0 0.0
    %183 = vmatpush1.msra.mxu0 %v168
    %184 = vmatprep.subr.mxu0 0.0
    %185 = vmatpush1.msra.mxu0 %v167
    %186 = vmatprep.subr.mxu0 0.0
    %187 = vmatpush1.msra.mxu0 %v166
    %188 = vmatprep.subr.mxu0 0.0
    %189 = vmatpush1.msra.mxu0 %v165
    %190 = vmatprep.subr.mxu0 0.0
    %191 = vmatpush1.msra.mxu0 %v164
    %192 = vmatprep.subr.mxu0 0.0
    %193 = vmatpush1.msra.mxu0 %v163
    %194 = vmatprep.subr.mxu0 0.0
    %195 = vmatpush1.msra.mxu0 %v162
    %196 = vmatprep.subr.mxu0 0.0
    %197 = vmatpush1.msra.mxu0 %v161
    %198 = vmatprep.subr.mxu0 0.0
    %199 = vmatpush1.msra.mxu0 %v160
    %200 = vmatprep.subr.mxu0 0.0
    %201 = vmatpush1.msra.mxu0 %v159
    %202 = vmatprep.subr.mxu0 0.0
    %203 = vmatpush1.msra.mxu0 %v158
    %204 = vmatprep.subr.mxu0 0.0
    %205 = vmatpush1.msra.mxu0 %v157
    %206 = vmatprep.subr.mxu0 0.0
    %207 = vmatpush1.msra.mxu0 %v156
    %208 = vmatprep.subr.mxu0 0.0
    %209 = vmatpush1.msra.mxu0 %v155
    %210 = vmatprep.subr.mxu0 0.0
    %211 = vmatpush2.msra.mxu0 0.0
    %212 = vmatprep.subr.mxu0 0.0
    %213 = vmatpush2.msra.mxu0 0.0
    %214 = vmatprep.subr.mxu0 0.0
    %215 = vmatpush2.msra.mxu0 0.0
    %216 = vmatprep.subr.mxu0 0.0
    %217 = vmatpush2.msra.mxu0 0.0
    %218 = vmatprep.subr.mxu0 0.0
    %219 = vmatpush2.msra.mxu0 0.0
    %220 = vmatprep.subr.mxu0 0.0
    %221 = vmatpush2.msra.mxu0 0.0
    %222 = vmatprep.subr.mxu0 0.0
    %223 = vmatpush2.msra.mxu0 0.0
    %224 = vmatprep.subr.mxu0 0.0
    %225 = vmatpush2.msra.mxu0 0.0
    %226 = vmatprep.subr.mxu0 0.0
    %227 = vmatpush2.msra.mxu0 0.0
    %228 = vmatprep.subr.mxu0 0.0
    %229 = vmatpush2.msra.mxu0 0.0
    %230 = vmatprep.subr.mxu0 0.0
    %231 = vmatpush2.msra.mxu0 0.0
    %232 = vmatprep.subr.mxu0 0.0
    %233 = vmatpush2.msra.mxu0 0.0
    %234 = vmatprep.subr.mxu0 0.0
    %235 = vmatpush2.msra.mxu0 0.0
    %236 = vmatprep.subr.mxu0 0.0
    %237 = vmatpush2.msra.mxu0 0.0
    %238 = vmatprep.subr.mxu0 0.0
    %239 = vmatpush2.msra.mxu0 0.0
    %240 = vmatprep.subr.mxu0 0.0
    %241 = vmatpush2.msra.mxu0 0.0
    %242 = vmatprep.mubr.f32.mxu0 0.0
    %243 = vmatmul.mubr.f32.gmra.mxu0 %v152
    %v244 = vpop.f32.mrf.mxu0
    %v245 = vadd.f32 %v176, %v244
    %v246 = vpop.f32.mrf.mxu0
    %247 = vdwg.mxu0
    %v248 = vxor.u32 %v245, 2147483648
    %v249 = vmul.f32 %v248, 1.442695
    %v250 = vpow.pop %v249
    %v251 = vadd.f32 %v250, 1.0
    %v252 = vrcp.pop %v251
    %v253 = vmul.f32 1.0, %v252
    %v254 = vmul.f32 %v245, %v253
    %v255 = vld [vmem:[#allocation7] sm:$0xff]
    %v256 = vld [vmem:[#allocation7 + $0x8] sm:$0xff]
    %v257 = vld [vmem:[#allocation7 + $0x10] sm:$0xff]
    %v258 = vld [vmem:[#allocation7 + $0x18] sm:$0xff]
    %v259 = vld [vmem:[#allocation7 + $0x20] sm:$0xff]
    %v260 = vld [vmem:[#allocation7 + $0x28] sm:$0xff]
    %v261 = vld [vmem:[#allocation7 + $0x30] sm:$0xff]
    %v262 = vld [vmem:[#allocation7 + $0x38] sm:$0xff]
    %v263 = vld [vmem:[#allocation7 + $0x40] sm:$0xff]
    %v264 = vld [vmem:[#allocation7 + $0x48] sm:$0xff]
    %v265 = vld [vmem:[#allocation7 + $0x50] sm:$0xff]
    %v266 = vld [vmem:[#allocation7 + $0x58] sm:$0xff]
    %v267 = vld [vmem:[#allocation7 + $0x60] sm:$0xff]
    %v268 = vld [vmem:[#allocation7 + $0x68] sm:$0xff]
    %v269 = vld [vmem:[#allocation7 + $0x70] sm:$0xff]
    %v270 = vld [vmem:[#allocation7 + $0x78] sm:$0xff]
    %v271 = vld [vmem:[%s5] sm:$0x1]
    %v273 = vlaneseq
    %v274 = vshrl.u32 %v273, 7
    %v275 = vsub.s32 0, %v274
    %v276 = vrot.slane %v271, %v275
    %278 = vmatprep.subr.mxu0 0.0
    %279 = vmatpush1.msra.mxu0 %v270
    %280 = vmatprep.subr.mxu0 0.0
    %281 = vmatpush1.msra.mxu0 %v269
    %282 = vmatprep.subr.mxu0 0.0
    %283 = vmatpush1.msra.mxu0 %v268
    %284 = vmatprep.subr.mxu0 0.0
    %285 = vmatpush1.msra.mxu0 %v267
    %286 = vmatprep.subr.mxu0 0.0
    %287 = vmatpush1.msra.mxu0 %v266
    %288 = vmatprep.subr.mxu0 0.0
    %289 = vmatpush1.msra.mxu0 %v265
    %290 = vmatprep.subr.mxu0 0.0
    %291 = vmatpush1.msra.mxu0 %v264
    %292 = vmatprep.subr.mxu0 0.0
    %293 = vmatpush1.msra.mxu0 %v263
    %294 = vmatprep.subr.mxu0 0.0
    %295 = vmatpush1.msra.mxu0 %v262
    %296 = vmatprep.subr.mxu0 0.0
    %297 = vmatpush1.msra.mxu0 %v261
    %298 = vmatprep.subr.mxu0 0.0
    %299 = vmatpush1.msra.mxu0 %v260
    %300 = vmatprep.subr.mxu0 0.0
    %301 = vmatpush1.msra.mxu0 %v259
    %302 = vmatprep.subr.mxu0 0.0
    %303 = vmatpush1.msra.mxu0 %v258
    %304 = vmatprep.subr.mxu0 0.0
    %305 = vmatpush1.msra.mxu0 %v257
    %306 = vmatprep.subr.mxu0 0.0
    %307 = vmatpush1.msra.mxu0 %v256
    %308 = vmatprep.subr.mxu0 0.0
    %309 = vmatpush1.msra.mxu0 %v255
    %310 = vmatprep.subr.mxu0 0.0
    %311 = vmatpush2.msra.mxu0 0.0
    %312 = vmatprep.subr.mxu0 0.0
    %313 = vmatpush2.msra.mxu0 0.0
    %314 = vmatprep.subr.mxu0 0.0
    %315 = vmatpush2.msra.mxu0 0.0
    %316 = vmatprep.subr.mxu0 0.0
    %317 = vmatpush2.msra.mxu0 0.0
    %318 = vmatprep.subr.mxu0 0.0
    %319 = vmatpush2.msra.mxu0 0.0
    %320 = vmatprep.subr.mxu0 0.0
    %321 = vmatpush2.msra.mxu0 0.0
    %322 = vmatprep.subr.mxu0 0.0
    %323 = vmatpush2.msra.mxu0 0.0
    %324 = vmatprep.subr.mxu0 0.0
    %325 = vmatpush2.msra.mxu0 0.0
    %326 = vmatprep.subr.mxu0 0.0
    %327 = vmatpush2.msra.mxu0 0.0
    %328 = vmatprep.subr.mxu0 0.0
    %329 = vmatpush2.msra.mxu0 0.0
    %330 = vmatprep.subr.mxu0 0.0
    %331 = vmatpush2.msra.mxu0 0.0
    %332 = vmatprep.subr.mxu0 0.0
    %333 = vmatpush2.msra.mxu0 0.0
    %334 = vmatprep.subr.mxu0 0.0
    %335 = vmatpush2.msra.mxu0 0.0
    %336 = vmatprep.subr.mxu0 0.0
    %337 = vmatpush2.msra.mxu0 0.0
    %338 = vmatprep.subr.mxu0 0.0
    %339 = vmatpush2.msra.mxu0 0.0
    %340 = vmatprep.subr.mxu0 0.0
    %341 = vmatpush2.msra.mxu0 0.0
    %342 = vmatprep.mubr.f32.mxu0 0.0
    %343 = vmatmul.mubr.f32.gmra.mxu0 %v254
    %v344 = vpop.f32.mrf.mxu0
    %v345 = vadd.f32 %v276, %v344
    %v346 = vpop.f32.mrf.mxu0
    %347 = vdwg.mxu0
    %v348 = vxor.u32 %v345, 2147483648
    %v349 = vmul.f32 %v348, 1.442695
    %v350 = vpow.pop %v349
    %v351 = vadd.f32 %v350, 1.0
    %v352 = vrcp.pop %v351
    %v353 = vmul.f32 1.0, %v352
    %v354 = vmul.f32 %v345, %v353
    %355 = vst [vmem:[#allocation8] sm:$0xff] %v354
    // Predicated region
    $region38: #{forward.1} parent=1 // pred_check
      _
    $region39: #{forward.1} parent=1 // pred_check_branch
      %357 = sbr.rel (0) target = $region41
    $region40: #{forward.1} parent=1 // pred_region
      %s359 = ssub.s32 128, 128
      %360 = vsyncadd [#allocation4], %s359
      %s362 = sshll.u32 [#allocation8], 4
      %s363 = int_to_ptr.vmem [resolvable:$true] %s362
      %365 = dma.vmem_to_hbm [thread:$0]  %s363, 128, %s6, [#allocation4]
    $region41: #{forward.1} parent=1 // pred_fallthru
      _
    // Predicated region
    $region42: #{forward.1} parent=1 // pred_check
      _
    $region43: #{forward.1} parent=1 // pred_check_branch
      %367 = sbr.rel (0) target = $region45
    $region44: #{forward.1} parent=1 // pred_region
      %368 = dma.done [#allocation4], 128
    $region45: #{forward.1} parent=1 // pred_fallthru
      _
    %369 = vsyncpa [#allocation3], 1
    %370 = vsyncpa [#allocation6], 1
    %371 = vsyncpa [#allocation4], 1

</llo_original>
